<compile_context>
chip_gen: v6e
topology: v6e:2x2x1
jax: 0.10.0
libtpu: 0.0.40
codegen_flags: <defaults>
</compile_context>

<pallas_src>
import math

import jax
import jax.numpy as jnp
import numpy as np
from jax import lax
from jax.experimental import pallas as pl
from jax.experimental.pallas import tpu as pltpu

# ---- module config (mirrors the PyTorch source) ----
ONE_HOT_FEA_LEN = 345
DENSE_FEA_LEN = 0            # dense_fea = []
CAT_FEA_LEN = 0              # cat_fea = []
EMB = 5                      # embedding_size
HEADS = 2                    # Interaction(2, emb, emb, emb)
NUM_FIELDS = DENSE_FEA_LEN + CAT_FEA_LEN + 1        # == 1
MLP_IN = NUM_FIELDS * HEADS * EMB                   # (dense + cat + 1) * 2 * emb = 10
H1, H2 = 256, 128
BN_EPS = 1e-5


def _round_up(x, m):
    return ((x + m - 1) // m) * m


def autoint_kernel(slopes_ref, x_ref, wint_ref, w1_ref, b1_ref, w2_ref, b2_ref,
                   wout_ref, o_ref):
    """One batch tile, feature-major: activation tiles are (features, TB)."""
    a1 = slopes_ref[0, 0]            # learnable PReLU slope (layer 1), from SMEM
    a2 = slopes_ref[0, 1]            # learnable PReLU slope (layer 2), from SMEM

    xT = x_ref[...]                                                # (E, TB) bf16

    # Interaction with F == 1: softmax over a single key == 1, so each head's
    # context equals its value projection -> zT = relu(W_int^T @ xT).
    zT = jnp.maximum(
        jnp.dot(wint_ref[...], xT, preferred_element_type=jnp.float32), 0.0)   # (10, TB)

    # Linear1 + folded eval-mode BatchNorm + PReLU (bf16 MXU operands, f32 acc).
    h1 = jnp.dot(w1_ref[...], zT.astype(jnp.bfloat16),
                 preferred_element_type=jnp.float32) + b1_ref[...]             # (256, TB)
    h1 = jnp.where(h1 >= 0.0, h1, a1 * h1).astype(jnp.bfloat16)   # bf16 staging

    # Linear2 + folded eval-mode BatchNorm + PReLU.
    h2 = jnp.dot(w2_ref[...], h1,
                 preferred_element_type=jnp.float32) + b2_ref[...]             # (128, TB)
    h2 = jnp.where(h2 >= 0.0, h2, a2 * h2)

    # Dropout is identity in eval mode.
    # TODO(synk): train-mode dropout (p=0.5) not implemented.

    # Final Linear (128 -> 1): weighted sublane reduce -> lane-dense (1, TB).
    o_ref[...] = jnp.sum(h2 * wout_ref[...], axis=0, keepdims=True)


def _build_fields(params, continous_fea, cate_fea_index, channel):
    """Field embeddings (B, F, E); empty dense/cat branches are skipped."""
    fields = []
    if DENSE_FEA_LEN > 0:
        # TODO(synk): DenseEmbedding source not in the snippet; assumed the
        # standard per-field dense embedding x[:, :, None] * W_dense.
        fields.append(continous_fea[:, :, None] * params['dense_w'][None, :, :])
    if CAT_FEA_LEN > 0:
        fields.append(jnp.take(params['embed'], cate_fea_index, axis=0))
    fields.append(jnp.take(params['channel_embed'], channel, axis=0))
    x = fields[0] if len(fields) == 1 else jnp.concatenate(fields, axis=1)
    return x.astype(jnp.float32)


def _choose_batch_tile(B, max_block_rows):
    """Padding-aware batch tile: multiple of 128 lanes, amortizes grid overhead."""
    max_tb = max(128, (max_block_rows // 128) * 128)
    n_tiles = max(1, math.ceil(B / max_tb))
    # v7x has 2 TensorCores; keep >= 2 parallel grid steps once B is big enough
    # for the split to beat the extra per-step overhead.
    if n_tiles == 1 and B > 512:
        n_tiles = 2
    tb = _round_up(math.ceil(B / n_tiles), 128)
    return min(tb, max_tb)


def autoint_forward(params, continous_fea, cate_fea_index, channel, *, max_block_rows=8192):
    """Embedding gathers + exact algebraic folding in JAX, then one fused Pallas kernel."""
    x = _build_fields(params, continous_fea, cate_fea_index, channel)     # (B, F, E)
    B, F, E = x.shape
    assert F == NUM_FIELDS == 1 and E == EMB

    # Feature-major (batch-in-lanes) input layout, bf16 MXU operand.
    xT = x.reshape(B, E).T.astype(jnp.bfloat16)                           # (E, B)

    # --- exact simplifications (eval mode) ---
    # Interaction with a single field: softmax == 1, heads == value projections.
    w_int = jnp.concatenate([params['wv'][h] for h in range(HEADS)], axis=1) \
        + params['wres']                                                  # (E, H*E)
    wintT = w_int.T.astype(jnp.bfloat16)                                  # (10, 5)
    # Fold eval-mode BatchNorm into the adjacent Linear (pre-transposed).
    s1 = params['g1'] * lax.rsqrt(params['v1'] + BN_EPS)                  # (1, H1)
    w1fT = (params['w1'] * s1).T.astype(jnp.bfloat16)                     # (256, 10) bf16
    b1fT = ((params['b1'] - params['m1']) * s1 + params['be1']).reshape(H1, 1)   # (256, 1)
    s2 = params['g2'] * lax.rsqrt(params['v2'] + BN_EPS)                  # (1, H2)
    w2fT = (params['w2'] * s2).T.astype(jnp.bfloat16)                     # (128, 256) bf16
    b2fT = ((params['b2'] - params['m2']) * s2 + params['be2']).reshape(H2, 1)   # (128, 1)
    wout_col = params['wout'].reshape(H2, 1).astype(jnp.float32)          # (128, 1)
    slopes = jnp.concatenate(
        [params['prelu1'].reshape(1), params['prelu2'].reshape(1)]
    ).reshape(1, 2).astype(jnp.float32)                                   # (1, 2) -> SMEM

    # --- batch tiling (lanes) ---
    TB = _choose_batch_tile(B, max_block_rows)
    B_pad = _round_up(B, TB)
    if B_pad != B:
        xT = jnp.pad(xT, ((0, 0), (0, B_pad - B)))
    grid = (B_pad // TB,)

    cost = pl.CostEstimate(
        flops=2 * B_pad * (EMB * HEADS * EMB + MLP_IN * H1 + H1 * H2 + H2),
        transcendentals=0,
        bytes_accessed=int(xT.size * 2 + B_pad * 4 + wintT.size * 2
                           + w1fT.size * 2 + b1fT.size * 4
                           + w2fT.size * 2 + b2fT.size * 4
                           + wout_col.size * 4 + slopes.size * 4),
    )

    out_row = pl.pallas_call(
        autoint_kernel,
        out_shape=jax.ShapeDtypeStruct((1, B_pad), jnp.float32),
        grid=grid,
        in_specs=[
            pl.BlockSpec(memory_space=pltpu.MemorySpace.SMEM),        # PReLU slopes
            pl.BlockSpec((EMB, TB), lambda i: (0, i)),                # xT: streamed tile
            pl.BlockSpec((HEADS * EMB, EMB), lambda i: (0, 0)),       # W_int^T: resident
            pl.BlockSpec((H1, MLP_IN), lambda i: (0, 0)),             # W1'^T (bf16): resident
            pl.BlockSpec((H1, 1), lambda i: (0, 0)),                  # b1': resident
            pl.BlockSpec((H2, H1), lambda i: (0, 0)),                 # W2'^T (bf16): resident
            pl.BlockSpec((H2, 1), lambda i: (0, 0)),                  # b2': resident
            pl.BlockSpec((H2, 1), lambda i: (0, 0)),                  # wout column: resident
        ],
        out_specs=pl.BlockSpec((1, TB), lambda i: (0, i)),            # lane-dense output slab
        compiler_params=pltpu.CompilerParams(dimension_semantics=("parallel",)),
        cost_estimate=cost,
    )(slopes, xT, wintT, w1fT, b1fT, w2fT, b2fT, wout_col)

    # Back to (B, 1) + output bias (trivial, fused by XLA).
    return out_row[0, :B].reshape(B, 1) + params['bout'].reshape(1, 1)


def reference_forward(params, continous_fea, cate_fea_index, channel):
    """Pure-JAX reference with the original (un-simplified) math."""
    x = _build_fields(params, continous_fea, cate_fea_index, channel)
    B, F, E = x.shape
    x2 = x.reshape(B * F, E)
    head_ctx = []
    for h in range(HEADS):
        qh = (x2 @ params['wq'][h]).reshape(B, F, E)
        kh = (x2 @ params['wk'][h]).reshape(B, F, E)
        vh = (x2 @ params['wv'][h]).reshape(B, F, E)
        s = jnp.einsum('bqd,bkd->bqk', qh, kh)
        a = jax.nn.softmax(s, axis=-1)
        head_ctx.append(jnp.einsum('bqk,bkd->bqd', a, vh))
    ctx = jnp.concatenate(head_ctx, axis=-1)
    res = (x2 @ params['wres']).reshape(B, F, HEADS * EMB)
    flat = jnp.maximum(ctx + res, 0.0).reshape(B, F * HEADS * EMB)
    h1 = flat @ params['w1'] + params['b1']
    h1 = params['g1'] * (h1 - params['m1']) * lax.rsqrt(params['v1'] + BN_EPS) + params['be1']
    h1 = jnp.where(h1 >= 0.0, h1, params['prelu1'] * h1)
    h2 = h1 @ params['w2'] + params['b2']
    h2 = params['g2'] * (h2 - params['m2']) * lax.rsqrt(params['v2'] + BN_EPS) + params['be2']
    h2 = jnp.where(h2 >= 0.0, h2, params['prelu2'] * h2)
    return h2 @ params['wout'] + params['bout']


def init_params(key):
    ks = jax.random.split(key, 12)

    def nrm(k, shape, scale=0.1):
        return scale * jax.random.normal(k, shape, dtype=jnp.float32)

    embed = nrm(ks[0], (ONE_HOT_FEA_LEN + 1, EMB))
    embed = embed.at[ONE_HOT_FEA_LEN].set(0.0)           # padding_idx row
    return dict(
        embed=embed,
        dense_w=nrm(ks[1], (DENSE_FEA_LEN, EMB)),        # empty (0 dense features)
        channel_embed=nrm(ks[2], (2, EMB)),
        # TODO(synk): Interaction source not in the snippet; standard AutoInt
        # interacting layer assumed (per-head QKV + softmax + residual + ReLU).
        wq=nrm(ks[3], (HEADS, EMB, EMB)),
        wk=nrm(ks[4], (HEADS, EMB, EMB)),
        wv=nrm(ks[5], (HEADS, EMB, EMB)),
        wres=nrm(ks[6], (EMB, HEADS * EMB)),
        w1=nrm(ks[7], (MLP_IN, H1)), b1=nrm(ks[8], (1, H1), 0.01),
        g1=jnp.ones((1, H1), jnp.float32), be1=jnp.zeros((1, H1), jnp.float32),
        m1=jnp.zeros((1, H1), jnp.float32), v1=jnp.ones((1, H1), jnp.float32),
        w2=nrm(ks[9], (H1, H2)), b2=nrm(ks[10], (1, H2), 0.01),
        g2=jnp.ones((1, H2), jnp.float32), be2=jnp.zeros((1, H2), jnp.float32),
        m2=jnp.zeros((1, H2), jnp.float32), v2=jnp.ones((1, H2), jnp.float32),
        # Learnable PReLU slopes (nn.PReLU default is 0.25; non-default values
        # here so the kernel's slope plumbing is actually exercised).
        prelu1=jnp.full((1,), 0.2, jnp.float32),
        prelu2=jnp.full((1,), 0.3, jnp.float32),
        wout=nrm(ks[11], (H2, 1)), bout=jnp.zeros((1, 1), jnp.float32),
    )


if __name__ == "__main__":
    key = jax.random.PRNGKey(0)
    kp, kd, kc, kch = jax.random.split(key, 4)
    params = init_params(kp)

    # Small test: exercises lane padding (B=12 -> padded to TB=128).
    B = 12
    continous_fea = jax.random.normal(kd, (B, DENSE_FEA_LEN), dtype=jnp.float32)   # (B, 0)
    cate_fea_index = jax.random.randint(kc, (B, CAT_FEA_LEN), 0, ONE_HOT_FEA_LEN,
                                        dtype=jnp.int32)                           # (B, 0)
    channel = jax.random.randint(kch, (B, 1), 0, 2, dtype=jnp.int32)               # (B, 1)

    out = autoint_forward(params, continous_fea, cate_fea_index, channel)
    out = jax.block_until_ready(out)
    assert out.shape == (B, 1)
    ref = reference_forward(params, continous_fea, cate_fea_index, channel)
    np.testing.assert_allclose(np.asarray(out), np.asarray(ref), rtol=2e-2, atol=2e-2)

    # Second test: multi-tile grid path (B=200, TB capped at 128 -> grid=(2,)).
    B2 = 200
    kd2, kc2, kch2 = jax.random.split(jax.random.PRNGKey(1), 3)
    continous_fea2 = jax.random.normal(kd2, (B2, DENSE_FEA_LEN), dtype=jnp.float32)
    cate_fea_index2 = jax.random.randint(kc2, (B2, CAT_FEA_LEN), 0, ONE_HOT_FEA_LEN,
                                         dtype=jnp.int32)
    channel2 = jax.random.randint(kch2, (B2, 1), 0, 2, dtype=jnp.int32)

    out2 = autoint_forward(params, continous_fea2, cate_fea_index2, channel2,
                           max_block_rows=128)
    out2 = jax.block_until_ready(out2)
    assert out2.shape == (B2, 1)
    ref2 = reference_forward(params, continous_fea2, cate_fea_index2, channel2)
    np.testing.assert_allclose(np.asarray(out2), np.asarray(ref2), rtol=2e-2, atol=2e-2)

    print("KERNEL_OK")
</pallas_src>

<mosaic_0001>
module attributes {stable_mosaic.version = 11 : i64} {
  func.func @autoint_kernel(%arg0: i32, %arg1: memref<1x2xf32, #tpu.memory_space<smem>>, %arg2: memref<5x128xbf16, #tpu.memory_space<vmem>>, %arg3: memref<10x5xbf16, #tpu.memory_space<vmem>>, %arg4: memref<256x10xbf16, #tpu.memory_space<vmem>>, %arg5: memref<256x1xf32, #tpu.memory_space<vmem>>, %arg6: memref<128x256xbf16, #tpu.memory_space<vmem>>, %arg7: memref<128x1xf32, #tpu.memory_space<vmem>>, %arg8: memref<128x1xf32, #tpu.memory_space<vmem>>, %arg9: memref<1x128xf32, #tpu.memory_space<vmem>>) attributes {dimension_semantics = [#tpu.dimension_semantics<parallel>], iteration_bounds = array<i64: 1>, scalar_prefetch = 0 : i64, scratch_operands = 0 : i64, tpu.core_type = #tpu.core_type<tc>, window_params = [{transform_indices = @transform_0, window_bounds = array<i64: 1, 2>}, {transform_indices = @transform_1, window_bounds = array<i64: 5, 128>}, {pipeline_mode = #tpu.pipeline_mode<synchronous>, transform_indices = @transform_2, window_bounds = array<i64: 10, 5>}, {pipeline_mode = #tpu.pipeline_mode<synchronous>, transform_indices = @transform_3, window_bounds = array<i64: 256, 10>}, {pipeline_mode = #tpu.pipeline_mode<synchronous>, transform_indices = @transform_4, window_bounds = array<i64: 256, 1>}, {pipeline_mode = #tpu.pipeline_mode<synchronous>, transform_indices = @transform_5, window_bounds = array<i64: 128, 256>}, {pipeline_mode = #tpu.pipeline_mode<synchronous>, transform_indices = @transform_6, window_bounds = array<i64: 128, 1>}, {pipeline_mode = #tpu.pipeline_mode<synchronous>, transform_indices = @transform_7, window_bounds = array<i64: 128, 1>}, {transform_indices = @transform_8, window_bounds = array<i64: 1, 128>}]} {
    %c0 = arith.constant 0 : index
    %c0_0 = arith.constant 0 : index
    %0 = memref.load %arg1[%c0, %c0_0] : memref<1x2xf32, #tpu.memory_space<smem>>
    %c0_1 = arith.constant 0 : index
    %c1 = arith.constant 1 : index
    %1 = memref.load %arg1[%c0_1, %c1] : memref<1x2xf32, #tpu.memory_space<smem>>
    %c0_2 = arith.constant 0 : index
    %c0_3 = arith.constant 0 : index
    %2 = vector.load %arg2[%c0_2, %c0_3] : memref<5x128xbf16, #tpu.memory_space<vmem>>, vector<5x128xbf16>
    %c0_4 = arith.constant 0 : index
    %c0_5 = arith.constant 0 : index
    %3 = vector.load %arg3[%c0_4, %c0_5] : memref<10x5xbf16, #tpu.memory_space<vmem>>, vector<10x5xbf16>
    %cst = arith.constant dense<0.000000e+00> : vector<10x128xf32>
    %4 = tpu.matmul %3, %2, %cst {dimension_numbers = #tpu.dot_dimension_numbers<[1], [0], [0], [1], [0, 0, 1, 1], [], []>} : vector<10x5xbf16>, vector<5x128xbf16>, vector<10x128xf32> -> vector<10x128xf32>
    %cst_6 = arith.constant 0.000000e+00 : f32
    %5 = vector.broadcast %cst_6 : f32 to vector<10x128xf32>
    %6 = arith.maximumf %4, %5 : vector<10x128xf32>
    %c0_7 = arith.constant 0 : index
    %c0_8 = arith.constant 0 : index
    %7 = vector.load %arg4[%c0_7, %c0_8] : memref<256x10xbf16, #tpu.memory_space<vmem>>, vector<256x10xbf16>
    %8 = arith.truncf %6 : vector<10x128xf32> to vector<10x128xbf16>
    %cst_9 = arith.constant dense<0.000000e+00> : vector<256x128xf32>
    %9 = tpu.matmul %7, %8, %cst_9 {dimension_numbers = #tpu.dot_dimension_numbers<[1], [0], [0], [1], [0, 0, 1, 1], [], []>} : vector<256x10xbf16>, vector<10x128xbf16>, vector<256x128xf32> -> vector<256x128xf32>
    %c0_10 = arith.constant 0 : index
    %c0_11 = arith.constant 0 : index
    %10 = vector.load %arg5[%c0_10, %c0_11] : memref<256x1xf32, #tpu.memory_space<vmem>>, vector<256x1xf32>
    %11 = vector.broadcast %10 : vector<256x1xf32> to vector<256x128xf32>
    %12 = arith.addf %9, %11 : vector<256x128xf32>
    %cst_12 = arith.constant 0.000000e+00 : f32
    %13 = vector.broadcast %cst_12 : f32 to vector<256x128xf32>
    %14 = arith.cmpf oge, %12, %13 : vector<256x128xf32>
    %15 = vector.broadcast %0 : f32 to vector<256x128xf32>
    %16 = arith.mulf %15, %12 : vector<256x128xf32>
    %17 = arith.select %14, %12, %16 : vector<256x128xi1>, vector<256x128xf32>
    %18 = arith.truncf %17 : vector<256x128xf32> to vector<256x128xbf16>
    %c0_13 = arith.constant 0 : index
    %c0_14 = arith.constant 0 : index
    %19 = vector.load %arg6[%c0_13, %c0_14] : memref<128x256xbf16, #tpu.memory_space<vmem>>, vector<128x256xbf16>
    %cst_15 = arith.constant dense<0.000000e+00> : vector<128x128xf32>
    %20 = tpu.matmul %19, %18, %cst_15 {dimension_numbers = #tpu.dot_dimension_numbers<[1], [0], [0], [1], [0, 0, 1, 1], [], []>} : vector<128x256xbf16>, vector<256x128xbf16>, vector<128x128xf32> -> vector<128x128xf32>
    %c0_16 = arith.constant 0 : index
    %c0_17 = arith.constant 0 : index
    %21 = vector.load %arg7[%c0_16, %c0_17] : memref<128x1xf32, #tpu.memory_space<vmem>>, vector<128x1xf32>
    %22 = vector.broadcast %21 : vector<128x1xf32> to vector<128x128xf32>
    %23 = arith.addf %20, %22 : vector<128x128xf32>
    %cst_18 = arith.constant 0.000000e+00 : f32
    %24 = vector.broadcast %cst_18 : f32 to vector<128x128xf32>
    %25 = arith.cmpf oge, %23, %24 : vector<128x128xf32>
    %26 = vector.broadcast %1 : f32 to vector<128x128xf32>
    %27 = arith.mulf %26, %23 : vector<128x128xf32>
    %28 = arith.select %25, %23, %27 : vector<128x128xi1>, vector<128x128xf32>
    %c0_19 = arith.constant 0 : index
    %c0_20 = arith.constant 0 : index
    %29 = vector.load %arg8[%c0_19, %c0_20] : memref<128x1xf32, #tpu.memory_space<vmem>>, vector<128x1xf32>
    %30 = vector.broadcast %29 : vector<128x1xf32> to vector<128x128xf32>
    %31 = arith.mulf %28, %30 : vector<128x128xf32>
    %cst_21 = arith.constant dense<0.000000e+00> : vector<128xf32>
    %32 = vector.multi_reduction <add>, %31, %cst_21 [0] : vector<128x128xf32> to vector<128xf32>
    %33 = vector.shape_cast %32 : vector<128xf32> to vector<1x128xf32>
    %c0_22 = arith.constant 0 : index
    %c0_23 = arith.constant 0 : index
    %34 = vector.load %arg9[%c0_22, %c0_23] : memref<1x128xf32, #tpu.memory_space<vmem>>, vector<1x128xf32>
    tpu.vector_store %arg9[%c0_22, %c0_23], %33 {strides = array<i32>} : memref<1x128xf32, #tpu.memory_space<vmem>>, vector<1x128xf32>,
    return
  }
  func.func @transform_0(%arg0: i32) -> (i32, i32) {
    %c0_i32 = arith.constant 0 : i32
    %c0_i32_0 = arith.constant 0 : i32
    %c0_i32_1 = arith.constant 0 : i32
    return %c0_i32, %c0_i32_0 : i32, i32
  }
  func.func @transform_1(%arg0: i32) -> (i32, i32) {
    %c0_i32 = arith.constant 0 : i32
    %c0_i32_0 = arith.constant 0 : i32
    return %c0_i32, %arg0 : i32, i32
  }
  func.func @transform_2(%arg0: i32) -> (i32, i32) {
    %c0_i32 = arith.constant 0 : i32
    %c0_i32_0 = arith.constant 0 : i32
    %c0_i32_1 = arith.constant 0 : i32
    return %c0_i32, %c0_i32_0 : i32, i32
  }
  func.func @transform_3(%arg0: i32) -> (i32, i32) {
    %c0_i32 = arith.constant 0 : i32
    %c0_i32_0 = arith.constant 0 : i32
    %c0_i32_1 = arith.constant 0 : i32
    return %c0_i32, %c0_i32_0 : i32, i32
  }
  func.func @transform_4(%arg0: i32) -> (i32, i32) {
    %c0_i32 = arith.constant 0 : i32
    %c0_i32_0 = arith.constant 0 : i32
    %c0_i32_1 = arith.constant 0 : i32
    return %c0_i32, %c0_i32_0 : i32, i32
  }
  func.func @transform_5(%arg0: i32) -> (i32, i32) {
    %c0_i32 = arith.constant 0 : i32
    %c0_i32_0 = arith.constant 0 : i32
    %c0_i32_1 = arith.constant 0 : i32
    return %c0_i32, %c0_i32_0 : i32, i32
  }
  func.func @transform_6(%arg0: i32) -> (i32, i32) {
    %c0_i32 = arith.constant 0 : i32
    %c0_i32_0 = arith.constant 0 : i32
    %c0_i32_1 = arith.constant 0 : i32
    return %c0_i32, %c0_i32_0 : i32, i32
  }
  func.func @transform_7(%arg0: i32) -> (i32, i32) {
    %c0_i32 = arith.constant 0 : i32
    %c0_i32_0 = arith.constant 0 : i32
    %c0_i32_1 = arith.constant 0 : i32
    return %c0_i32, %c0_i32_0 : i32, i32
  }
  func.func @transform_8(%arg0: i32) -> (i32, i32) {
    %c0_i32 = arith.constant 0 : i32
    %c0_i32_0 = arith.constant 0 : i32
    return %c0_i32, %arg0 : i32, i32
  }
}

</mosaic_0001>

<llo_original>
// kernel: tpu_custom_call.1
$region0: #{tpu_custom_call.1}
  #allocation0 [shape = 'u32[]', space=smem, size = 0x4, offset = 0x4, fixed_abs, tag = 'smem constant byte address 0x4 - core index']
  #allocation1 [shape = 'u32[144,128]{1,0:T(1,128)}', space=vmem, size = 0x12000, scoped, tag = 'internal scratch']
  %s0 = inlined_call_operand.vmem [shape: f32[1,2], index: 0, kind: input, shape index: {}]
  %s1 = inlined_call_operand.vmem [shape: bf16[5,128], index: 1, kind: input, shape index: {}]
  %s2 = inlined_call_operand.vmem [shape: bf16[10,5], index: 2, kind: input, shape index: {}]
  %s3 = inlined_call_operand.vmem [shape: bf16[256,10], index: 3, kind: input, shape index: {}]
  %s4 = inlined_call_operand.vmem [shape: f32[256,1], index: 4, kind: input, shape index: {}]
  %s5 = inlined_call_operand.vmem [shape: bf16[128,256], index: 5, kind: input, shape index: {}]
  %s6 = inlined_call_operand.vmem [shape: f32[128,1], index: 6, kind: input, shape index: {}]
  %s7 = inlined_call_operand.vmem [shape: f32[128,1], index: 7, kind: input, shape index: {}]
  %s8 = inlined_call_operand.hbm [shape: f32[1,128], index: 8, kind: output, shape index: {}]
  %s9 = sld [smem:[#allocation0]]
  $region46: #{tpu_custom_call.1} parent=0
    _
  %s11 = ssub.s32 1, %s9
  %s12 = scalar_select 0, %s11, %s9
  $region1: #{tpu_custom_call.1} parent=0
    #allocation2 [shape = 'u8[512]{0}', space=smem, size = 0x200, scoped, tag = 'input window, operand 0, single buffered']
    #allocation3 [shape = 's32[1]{0}', space=sflag, size = 0x4, scoped, tag = 'scoped memory for tpu_custom_call.1']
    #allocation4 [shape = 's32[1]{0}', space=sflag, size = 0x4, scoped, tag = 'scoped memory for tpu_custom_call.1']
    #allocation5 [shape = 'u8[512]{0}', space=vmem, size = 0x400, scoped, tag = 'output window, operand 0, single buffered']
    %13 = vsyncpa [#allocation4], 0
    %14 = vsyncpa [#allocation3], 0
    // Predicated region
    $region2: #{tpu_custom_call.1} parent=1 // pred_check
      _
    $region3: #{tpu_custom_call.1} parent=1 // pred_check_branch
      %16 = sbr.rel (0) target = $region5
    $region4: #{tpu_custom_call.1} parent=1 // pred_region
      %s18 = ssub.s32 16, 16
      %19 = vsyncadd [#allocation4], %s18
      %s21 = sshll.u32 %s0, 4
      %s22 = int_to_ptr.vmem [resolvable:$true] %s21
      %24 = dma.vmem_to_smem %s22, 16, [#allocation2], [#allocation4]
    $region5: #{tpu_custom_call.1} parent=1 // pred_fallthru
      _
    // Predicated region
    $region6: #{tpu_custom_call.1} parent=1 // pred_check
      _
    $region7: #{tpu_custom_call.1} parent=1 // pred_check_branch
      %26 = sbr.rel (0) target = $region9
    $region8: #{tpu_custom_call.1} parent=1 // pred_region
      _
    $region9: #{tpu_custom_call.1} parent=1 // pred_fallthru
      _
    // Predicated region
    $region10: #{tpu_custom_call.1} parent=1 // pred_check
      _
    $region11: #{tpu_custom_call.1} parent=1 // pred_check_branch
      %28 = sbr.rel (0) target = $region13
    $region12: #{tpu_custom_call.1} parent=1 // pred_region
      _
    $region13: #{tpu_custom_call.1} parent=1 // pred_fallthru
      _
    // Predicated region
    $region14: #{tpu_custom_call.1} parent=1 // pred_check
      _
    $region15: #{tpu_custom_call.1} parent=1 // pred_check_branch
      %30 = sbr.rel (0) target = $region17
    $region16: #{tpu_custom_call.1} parent=1 // pred_region
      _
    $region17: #{tpu_custom_call.1} parent=1 // pred_fallthru
      _
    // Predicated region
    $region18: #{tpu_custom_call.1} parent=1 // pred_check
      _
    $region19: #{tpu_custom_call.1} parent=1 // pred_check_branch
      %32 = sbr.rel (0) target = $region21
    $region20: #{tpu_custom_call.1} parent=1 // pred_region
      _
    $region21: #{tpu_custom_call.1} parent=1 // pred_fallthru
      _
    // Predicated region
    $region22: #{tpu_custom_call.1} parent=1 // pred_check
      _
    $region23: #{tpu_custom_call.1} parent=1 // pred_check_branch
      %34 = sbr.rel (0) target = $region25
    $region24: #{tpu_custom_call.1} parent=1 // pred_region
      _
    $region25: #{tpu_custom_call.1} parent=1 // pred_fallthru
      _
    // Predicated region
    $region26: #{tpu_custom_call.1} parent=1 // pred_check
      _
    $region27: #{tpu_custom_call.1} parent=1 // pred_check_branch
      %36 = sbr.rel (0) target = $region29
    $region28: #{tpu_custom_call.1} parent=1 // pred_region
      _
    $region29: #{tpu_custom_call.1} parent=1 // pred_fallthru
      _
    // Predicated region
    $region30: #{tpu_custom_call.1} parent=1 // pred_check
      _
    $region31: #{tpu_custom_call.1} parent=1 // pred_check_branch
      %38 = sbr.rel (0) target = $region33
    $region32: #{tpu_custom_call.1} parent=1 // pred_region
      _
    $region33: #{tpu_custom_call.1} parent=1 // pred_fallthru
      _
    // Predicated region
    $region34: #{tpu_custom_call.1} parent=1 // pred_check
      _
    $region35: #{tpu_custom_call.1} parent=1 // pred_check_branch
      %40 = sbr.rel (0) target = $region37
    $region36: #{tpu_custom_call.1} parent=1 // pred_region
      %41 = dma.done [#allocation4], 16
    $region37: #{tpu_custom_call.1} parent=1 // pred_fallthru
      _
    %42 = sfence
    %s44 = sld [smem:[#allocation2]]
    %s45 = sld [smem:[#allocation2 + $0x1]]
    %v46 = vld [vmem:[%s1] sm:$0x7]
    %v47 = vld [vmem:[%s2] sm:$0xf]
    %v48 = vld [vmem:[%s2 + $0x4] sm:$0x1]
    %v51 = vunpack.c.l.b16 %v47
    %v52 = vunpack.c.l.b16 %v48
    %v53 = vpack.c.b16 %v52, %v51
    %vm54 = vcmask 39936
    %v56 = vsel %vm54, %v53, 0
    %vm58 = vcmask 1041408
    %vm59 = vcmask 1042432
    %v60 = vsel %vm58, 4294967295, 65535
    %v61 = vsel %vm59, %v60, 0
    %v63 = vand.u32 %v46, %v61
    %65 = vmatprep.subr.bf16.mxu0 0
    %66 = vmatpush1.bf16.msra.mxu0 0
    %67 = vmatprep.subr.bf16.mxu0 0
    %68 = vmatpush1.bf16.msra.mxu0 0
    %69 = vmatprep.subr.bf16.mxu0 0
    %70 = vmatpush1.bf16.msra.mxu0 0
    %71 = vmatprep.subr.bf16.mxu0 0
    %72 = vmatpush1.bf16.msra.mxu0 0
    %73 = vmatprep.subr.bf16.mxu0 0
    %74 = vmatpush1.bf16.msra.mxu0 0
    %75 = vmatprep.subr.bf16.mxu0 0
    %76 = vmatpush1.bf16.msra.mxu0 0
    %77 = vmatprep.subr.bf16.mxu0 0
    %78 = vmatpush1.bf16.msra.mxu0 0
    %79 = vmatprep.subr.bf16.mxu0 0
    %80 = vmatpush1.bf16.msra.mxu0 %v63
    %81 = vmatprep.subr.bf16.mxu0 0
    %82 = vmatpush2.bf16.msra.mxu0 0
    %83 = vmatprep.subr.bf16.mxu0 0
    %84 = vmatpush2.bf16.msra.mxu0 0
    %85 = vmatprep.subr.bf16.mxu0 0
    %86 = vmatpush2.bf16.msra.mxu0 0
    %87 = vmatprep.subr.bf16.mxu0 0
    %88 = vmatpush2.bf16.msra.mxu0 0
    %89 = vmatprep.subr.bf16.mxu0 0
    %90 = vmatpush2.bf16.msra.mxu0 0
    %91 = vmatprep.subr.bf16.mxu0 0
    %92 = vmatpush2.bf16.msra.mxu0 0
    %93 = vmatprep.subr.bf16.mxu0 0
    %94 = vmatpush2.bf16.msra.mxu0 0
    %95 = vmatprep.subr.bf16.mxu0 0
    %96 = vmatpush2.bf16.msra.mxu0 0
    %97 = vmatprep.mubr.bf16.mxu0 0
    %98 = vmatmul.mubr.bf16.gmra.mxu0 %v56
    %v99 = vpop.f32.mrf.mxu0
    %v100 = vadd.f32 0.0, %v99
    %v101 = vpop.f32.mrf.mxu0
    %v102 = vpop.f32.mrf.mxu0
    %v103 = vadd.f32 0.0, %v102
    %v104 = vpop.f32.mrf.mxu0
    %105 = vdwg.mxu0
    %v106 = vmax.f32 %v100, 0.0
    %v107 = vmax.f32 %v103, 0.0
    %v108 = vld [vmem:[%s3] sm:$0xf]
    %v109 = vld [vmem:[%s3 + $0x4] sm:$0xf]
    %v110 = vld [vmem:[%s3 + $0x8] sm:$0xf]
    %v111 = vld [vmem:[%s3 + $0xc] sm:$0xf]
    %v112 = vld [vmem:[%s3 + $0x10] sm:$0xf]
    %v113 = vld [vmem:[%s3 + $0x14] sm:$0xf]
    %v114 = vld [vmem:[%s3 + $0x18] sm:$0xf]
    %v115 = vld [vmem:[%s3 + $0x1c] sm:$0xf]
    %v116 = vld [vmem:[%s3 + $0x20] sm:$0xf]
    %v117 = vld [vmem:[%s3 + $0x24] sm:$0xf]
    %v118 = vld [vmem:[%s3 + $0x28] sm:$0xf]
    %v119 = vld [vmem:[%s3 + $0x2c] sm:$0xf]
    %v120 = vld [vmem:[%s3 + $0x30] sm:$0xf]
    %v121 = vld [vmem:[%s3 + $0x34] sm:$0xf]
    %v122 = vld [vmem:[%s3 + $0x38] sm:$0xf]
    %v123 = vld [vmem:[%s3 + $0x3c] sm:$0xf]
    %v124 = vld [vmem:[%s3 + $0x40] sm:$0xf]
    %v125 = vld [vmem:[%s3 + $0x44] sm:$0xf]
    %v126 = vld [vmem:[%s3 + $0x48] sm:$0xf]
    %v127 = vld [vmem:[%s3 + $0x4c] sm:$0xf]
    %v128 = vld [vmem:[%s3 + $0x50] sm:$0xf]
    %v129 = vld [vmem:[%s3 + $0x54] sm:$0xf]
    %v130 = vld [vmem:[%s3 + $0x58] sm:$0xf]
    %v131 = vld [vmem:[%s3 + $0x5c] sm:$0xf]
    %v132 = vld [vmem:[%s3 + $0x60] sm:$0xf]
    %v133 = vld [vmem:[%s3 + $0x64] sm:$0xf]
    %v134 = vld [vmem:[%s3 + $0x68] sm:$0xf]
    %v135 = vld [vmem:[%s3 + $0x6c] sm:$0xf]
    %v136 = vld [vmem:[%s3 + $0x70] sm:$0xf]
    %v137 = vld [vmem:[%s3 + $0x74] sm:$0xf]
    %v138 = vld [vmem:[%s3 + $0x78] sm:$0xf]
    %v139 = vld [vmem:[%s3 + $0x7c] sm:$0xf]
    %v140 = vpack.c.bf16 %v107, %v106
    %v141 = vld [vmem:[%s4] sm:$0xff]
    %v142 = vld [vmem:[%s4 + $0x8] sm:$0xff]
    %v143 = vld [vmem:[%s4 + $0x10] sm:$0xff]
    %v144 = vld [vmem:[%s4 + $0x18] sm:$0xff]
    %v145 = vld [vmem:[%s4 + $0x20] sm:$0xff]
    %v146 = vld [vmem:[%s4 + $0x28] sm:$0xff]
    %v147 = vld [vmem:[%s4 + $0x30] sm:$0xff]
    %v148 = vld [vmem:[%s4 + $0x38] sm:$0xff]
    %v149 = vld [vmem:[%s4 + $0x40] sm:$0xff]
    %v150 = vld [vmem:[%s4 + $0x48] sm:$0xff]
    %v151 = vld [vmem:[%s4 + $0x50] sm:$0xff]
    %v152 = vld [vmem:[%s4 + $0x58] sm:$0xff]
    %v153 = vld [vmem:[%s4 + $0x60] sm:$0xff]
    %v154 = vld [vmem:[%s4 + $0x68] sm:$0xff]
    %v155 = vld [vmem:[%s4 + $0x70] sm:$0xff]
    %v156 = vld [vmem:[%s4 + $0x78] sm:$0xff]
    %v157 = vld [vmem:[%s4 + $0x80] sm:$0xff]
    %v158 = vld [vmem:[%s4 + $0x88] sm:$0xff]
    %v159 = vld [vmem:[%s4 + $0x90] sm:$0xff]
    %v160 = vld [vmem:[%s4 + $0x98] sm:$0xff]
    %v161 = vld [vmem:[%s4 + $0xa0] sm:$0xff]
    %v162 = vld [vmem:[%s4 + $0xa8] sm:$0xff]
    %v163 = vld [vmem:[%s4 + $0xb0] sm:$0xff]
    %v164 = vld [vmem:[%s4 + $0xb8] sm:$0xff]
    %v165 = vld [vmem:[%s4 + $0xc0] sm:$0xff]
    %v166 = vld [vmem:[%s4 + $0xc8] sm:$0xff]
    %v167 = vld [vmem:[%s4 + $0xd0] sm:$0xff]
    %v168 = vld [vmem:[%s4 + $0xd8] sm:$0xff]
    %v169 = vld [vmem:[%s4 + $0xe0] sm:$0xff]
    %v170 = vld [vmem:[%s4 + $0xe8] sm:$0xff]
    %v171 = vld [vmem:[%s4 + $0xf0] sm:$0xff]
    %v172 = vld [vmem:[%s4 + $0xf8] sm:$0xff]
    %174 = vset.pattern.permute.xlu0 0
    %175 = vperm.xlu0 %174, %v141
    %v176 = vpop.permute.xlu0 %175
    %179 = vset.pattern.permute.xlu0 0
    %180 = vperm.xlu0 %179, %v142
    %v181 = vpop.permute.xlu0 %180
    %184 = vset.pattern.permute.xlu0 0
    %185 = vperm.xlu0 %184, %v143
    %v186 = vpop.permute.xlu0 %185
    %189 = vset.pattern.permute.xlu0 0
    %190 = vperm.xlu0 %189, %v144
    %v191 = vpop.permute.xlu0 %190
    %194 = vset.pattern.permute.xlu0 0
    %195 = vperm.xlu0 %194, %v145
    %v196 = vpop.permute.xlu0 %195
    %199 = vset.pattern.permute.xlu0 0
    %200 = vperm.xlu0 %199, %v146
    %v201 = vpop.permute.xlu0 %200
    %204 = vset.pattern.permute.xlu0 0
    %205 = vperm.xlu0 %204, %v147
    %v206 = vpop.permute.xlu0 %205
    %209 = vset.pattern.permute.xlu0 0
    %210 = vperm.xlu0 %209, %v148
    %v211 = vpop.permute.xlu0 %210
    %214 = vset.pattern.permute.xlu0 0
    %215 = vperm.xlu0 %214, %v149
    %v216 = vpop.permute.xlu0 %215
    %219 = vset.pattern.permute.xlu0 0
    %220 = vperm.xlu0 %219, %v150
    %v221 = vpop.permute.xlu0 %220
    %224 = vset.pattern.permute.xlu0 0
    %225 = vperm.xlu0 %224, %v151
    %v226 = vpop.permute.xlu0 %225
    %229 = vset.pattern.permute.xlu0 0
    %230 = vperm.xlu0 %229, %v152
    %v231 = vpop.permute.xlu0 %230
    %234 = vset.pattern.permute.xlu0 0
    %235 = vperm.xlu0 %234, %v153
    %v236 = vpop.permute.xlu0 %235
    %239 = vset.pattern.permute.xlu0 0
    %240 = vperm.xlu0 %239, %v154
    %v241 = vpop.permute.xlu0 %240
    %244 = vset.pattern.permute.xlu0 0
    %245 = vperm.xlu0 %244, %v155
    %v246 = vpop.permute.xlu0 %245
    %249 = vset.pattern.permute.xlu0 0
    %250 = vperm.xlu0 %249, %v156
    %v251 = vpop.permute.xlu0 %250
    %254 = vset.pattern.permute.xlu0 0
    %255 = vperm.xlu0 %254, %v157
    %v256 = vpop.permute.xlu0 %255
    %259 = vset.pattern.permute.xlu0 0
    %260 = vperm.xlu0 %259, %v158
    %v261 = vpop.permute.xlu0 %260
    %264 = vset.pattern.permute.xlu0 0
    %265 = vperm.xlu0 %264, %v159
    %v266 = vpop.permute.xlu0 %265
    %269 = vset.pattern.permute.xlu0 0
    %270 = vperm.xlu0 %269, %v160
    %v271 = vpop.permute.xlu0 %270
    %274 = vset.pattern.permute.xlu0 0
    %275 = vperm.xlu0 %274, %v161
    %v276 = vpop.permute.xlu0 %275
    %279 = vset.pattern.permute.xlu0 0
    %280 = vperm.xlu0 %279, %v162
    %v281 = vpop.permute.xlu0 %280
    %284 = vset.pattern.permute.xlu0 0
    %285 = vperm.xlu0 %284, %v163
    %v286 = vpop.permute.xlu0 %285
    %289 = vset.pattern.permute.xlu0 0
    %290 = vperm.xlu0 %289, %v164
    %v291 = vpop.permute.xlu0 %290
    %294 = vset.pattern.permute.xlu0 0
    %295 = vperm.xlu0 %294, %v165
    %v296 = vpop.permute.xlu0 %295
    %299 = vset.pattern.permute.xlu0 0
    %300 = vperm.xlu0 %299, %v166
    %v301 = vpop.permute.xlu0 %300
    %304 = vset.pattern.permute.xlu0 0
    %305 = vperm.xlu0 %304, %v167
    %v306 = vpop.permute.xlu0 %305
    %309 = vset.pattern.permute.xlu0 0
    %310 = vperm.xlu0 %309, %v168
    %v311 = vpop.permute.xlu0 %310
    %314 = vset.pattern.permute.xlu0 0
    %315 = vperm.xlu0 %314, %v169
    %v316 = vpop.permute.xlu0 %315
    %319 = vset.pattern.permute.xlu0 0
    %320 = vperm.xlu0 %319, %v170
    %v321 = vpop.permute.xlu0 %320
    %324 = vset.pattern.permute.xlu0 0
    %325 = vperm.xlu0 %324, %v171
    %v326 = vpop.permute.xlu0 %325
    %329 = vset.pattern.permute.xlu0 0
    %330 = vperm.xlu0 %329, %v172
    %v331 = vpop.permute.xlu0 %330
    %v365 = vunpack.c.l.b16 %v108
    %v366 = vunpack.c.l.b16 %v109
    %v367 = vunpack.c.l.b16 %v110
    %v368 = vunpack.c.l.b16 %v111
    %v369 = vunpack.c.l.b16 %v112
    %v370 = vunpack.c.l.b16 %v113
    %v371 = vunpack.c.l.b16 %v114
    %v372 = vunpack.c.l.b16 %v115
    %v373 = vunpack.c.l.b16 %v116
    %v374 = vunpack.c.l.b16 %v117
    %v375 = vunpack.c.l.b16 %v118
    %v376 = vunpack.c.l.b16 %v119
    %v377 = vunpack.c.l.b16 %v120
    %v378 = vunpack.c.l.b16 %v121
    %v379 = vunpack.c.l.b16 %v122
    %v380 = vunpack.c.l.b16 %v123
    %v381 = vunpack.c.l.b16 %v124
    %v382 = vunpack.c.l.b16 %v125
    %v383 = vunpack.c.l.b16 %v126
    %v384 = vunpack.c.l.b16 %v127
    %v385 = vunpack.c.l.b16 %v128
    %v386 = vunpack.c.l.b16 %v129
    %v387 = vunpack.c.l.b16 %v130
    %v388 = vunpack.c.l.b16 %v131
    %v389 = vunpack.c.l.b16 %v132
    %v390 = vunpack.c.l.b16 %v133
    %v391 = vunpack.c.l.b16 %v134
    %v392 = vunpack.c.l.b16 %v135
    %v393 = vunpack.c.l.b16 %v136
    %v394 = vunpack.c.l.b16 %v137
    %v395 = vunpack.c.l.b16 %v138
    %v396 = vunpack.c.l.b16 %v139
    %v397 = vpack.c.b16 %v366, %v365
    %v398 = vpack.c.b16 %v368, %v367
    %v399 = vpack.c.b16 %v370, %v369
    %v400 = vpack.c.b16 %v372, %v371
    %v401 = vpack.c.b16 %v374, %v373
    %v402 = vpack.c.b16 %v376, %v375
    %v403 = vpack.c.b16 %v378, %v377
    %v404 = vpack.c.b16 %v380, %v379
    %v405 = vpack.c.b16 %v382, %v381
    %v406 = vpack.c.b16 %v384, %v383
    %v407 = vpack.c.b16 %v386, %v385
    %v408 = vpack.c.b16 %v388, %v387
    %v409 = vpack.c.b16 %v390, %v389
    %v410 = vpack.c.b16 %v392, %v391
    %v411 = vpack.c.b16 %v394, %v393
    %v412 = vpack.c.b16 %v396, %v395
    %vm413 = vcmask 80896
    %v415 = vsel %vm413, %v397, 0
    %v418 = vsel %vm413, %v398, 0
    %v421 = vsel %vm413, %v399, 0
    %v424 = vsel %vm413, %v400, 0
    %v427 = vsel %vm413, %v401, 0
    %v430 = vsel %vm413, %v402, 0
    %v433 = vsel %vm413, %v403, 0
    %v436 = vsel %vm413, %v404, 0
    %v439 = vsel %vm413, %v405, 0
    %v442 = vsel %vm413, %v406, 0
    %v445 = vsel %vm413, %v407, 0
    %v448 = vsel %vm413, %v408, 0
    %v451 = vsel %vm413, %v409, 0
    %v454 = vsel %vm413, %v410, 0
    %v457 = vsel %vm413, %v411, 0
    %v460 = vsel %vm413, %v412, 0
    %vm462 = vcmask 1044480
    %v464 = vsel %vm462, %v140, 0
    %466 = vmatprep.subr.bf16.mxu0 0
    %467 = vmatpush1.bf16.msra.mxu0 0
    %468 = vmatprep.subr.bf16.mxu0 0
    %469 = vmatpush1.bf16.msra.mxu0 0
    %470 = vmatprep.subr.bf16.mxu0 0
    %471 = vmatpush1.bf16.msra.mxu0 0
    %472 = vmatprep.subr.bf16.mxu0 0
    %473 = vmatpush1.bf16.msra.mxu0 0
    %474 = vmatprep.subr.bf16.mxu0 0
    %475 = vmatpush1.bf16.msra.mxu0 0
    %476 = vmatprep.subr.bf16.mxu0 0
    %477 = vmatpush1.bf16.msra.mxu0 0
    %478 = vmatprep.subr.bf16.mxu0 0
    %479 = vmatpush1.bf16.msra.mxu0 0
    %480 = vmatprep.subr.bf16.mxu0 0
    %481 = vmatpush1.bf16.msra.mxu0 %v464
    %482 = vmatprep.subr.bf16.mxu0 0
    %483 = vmatpush2.bf16.msra.mxu0 0
    %484 = vmatprep.subr.bf16.mxu0 0
    %485 = vmatpush2.bf16.msra.mxu0 0
    %486 = vmatprep.subr.bf16.mxu0 0
    %487 = vmatpush2.bf16.msra.mxu0 0
    %488 = vmatprep.subr.bf16.mxu0 0
    %489 = vmatpush2.bf16.msra.mxu0 0
    %490 = vmatprep.subr.bf16.mxu0 0
    %491 = vmatpush2.bf16.msra.mxu0 0
    %492 = vmatprep.subr.bf16.mxu0 0
    %493 = vmatpush2.bf16.msra.mxu0 0
    %494 = vmatprep.subr.bf16.mxu0 0
    %495 = vmatpush2.bf16.msra.mxu0 0
    %496 = vmatprep.subr.bf16.mxu0 0
    %497 = vmatpush2.bf16.msra.mxu0 0
    %498 = vmatprep.mubr.bf16.mxu0 0
    %499 = vmatmul.mubr.bf16.gmra.mxu0 %v415
    %v500 = vpop.f32.mrf.mxu0
    %v501 = vadd.f32 %v176, %v500
    %v502 = vpop.f32.mrf.mxu0
    %v503 = vpop.f32.mrf.mxu0
    %v504 = vadd.f32 %v181, %v503
    %v505 = vpop.f32.mrf.mxu0
    %506 = vmatprep.mubr.bf16.mxu0 0
    %507 = vmatmul.mubr.bf16.gmra.mxu0 %v418
    %v508 = vpop.f32.mrf.mxu0
    %v509 = vadd.f32 %v186, %v508
    %v510 = vpop.f32.mrf.mxu0
    %v511 = vpop.f32.mrf.mxu0
    %v512 = vadd.f32 %v191, %v511
    %v513 = vpop.f32.mrf.mxu0
    %514 = vmatprep.mubr.bf16.mxu0 0
    %515 = vmatmul.mubr.bf16.gmra.mxu0 %v421
    %v516 = vpop.f32.mrf.mxu0
    %v517 = vadd.f32 %v196, %v516
    %v518 = vpop.f32.mrf.mxu0
    %v519 = vpop.f32.mrf.mxu0
    %v520 = vadd.f32 %v201, %v519
    %v521 = vpop.f32.mrf.mxu0
    %522 = vmatprep.mubr.bf16.mxu0 0
    %523 = vmatmul.mubr.bf16.gmra.mxu0 %v424
    %v524 = vpop.f32.mrf.mxu0
    %v525 = vadd.f32 %v206, %v524
    %v526 = vpop.f32.mrf.mxu0
    %v527 = vpop.f32.mrf.mxu0
    %v528 = vadd.f32 %v211, %v527
    %v529 = vpop.f32.mrf.mxu0
    %530 = vmatprep.mubr.bf16.mxu0 0
    %531 = vmatmul.mubr.bf16.gmra.mxu0 %v427
    %v532 = vpop.f32.mrf.mxu0
    %v533 = vadd.f32 %v216, %v532
    %v534 = vpop.f32.mrf.mxu0
    %v535 = vpop.f32.mrf.mxu0
    %v536 = vadd.f32 %v221, %v535
    %v537 = vpop.f32.mrf.mxu0
    %538 = vmatprep.mubr.bf16.mxu0 0
    %539 = vmatmul.mubr.bf16.gmra.mxu0 %v430
    %v540 = vpop.f32.mrf.mxu0
    %v541 = vadd.f32 %v226, %v540
    %v542 = vpop.f32.mrf.mxu0
    %v543 = vpop.f32.mrf.mxu0
    %v544 = vadd.f32 %v231, %v543
    %v545 = vpop.f32.mrf.mxu0
    %546 = vmatprep.mubr.bf16.mxu0 0
    %547 = vmatmul.mubr.bf16.gmra.mxu0 %v433
    %v548 = vpop.f32.mrf.mxu0
    %v549 = vadd.f32 %v236, %v548
    %v550 = vpop.f32.mrf.mxu0
    %v551 = vpop.f32.mrf.mxu0
    %v552 = vadd.f32 %v241, %v551
    %v553 = vpop.f32.mrf.mxu0
    %554 = vmatprep.mubr.bf16.mxu0 0
    %555 = vmatmul.mubr.bf16.gmra.mxu0 %v436
    %v556 = vpop.f32.mrf.mxu0
    %v557 = vadd.f32 %v246, %v556
    %v558 = vpop.f32.mrf.mxu0
    %v559 = vpop.f32.mrf.mxu0
    %v560 = vadd.f32 %v251, %v559
    %v561 = vpop.f32.mrf.mxu0
    %562 = vmatprep.mubr.bf16.mxu0 0
    %563 = vmatmul.mubr.bf16.gmra.mxu0 %v439
    %v564 = vpop.f32.mrf.mxu0
    %v565 = vadd.f32 %v256, %v564
    %v566 = vpop.f32.mrf.mxu0
    %v567 = vpop.f32.mrf.mxu0
    %v568 = vadd.f32 %v261, %v567
    %v569 = vpop.f32.mrf.mxu0
    %570 = vmatprep.mubr.bf16.mxu0 0
    %571 = vmatmul.mubr.bf16.gmra.mxu0 %v442
    %v572 = vpop.f32.mrf.mxu0
    %v573 = vadd.f32 %v266, %v572
    %v574 = vpop.f32.mrf.mxu0
    %v575 = vpop.f32.mrf.mxu0
    %v576 = vadd.f32 %v271, %v575
    %v577 = vpop.f32.mrf.mxu0
    %578 = vmatprep.mubr.bf16.mxu0 0
    %579 = vmatmul.mubr.bf16.gmra.mxu0 %v445
    %v580 = vpop.f32.mrf.mxu0
    %v581 = vadd.f32 %v276, %v580
    %v582 = vpop.f32.mrf.mxu0
    %v583 = vpop.f32.mrf.mxu0
    %v584 = vadd.f32 %v281, %v583
    %v585 = vpop.f32.mrf.mxu0
    %586 = vmatprep.mubr.bf16.mxu0 0
    %587 = vmatmul.mubr.bf16.gmra.mxu0 %v448
    %v588 = vpop.f32.mrf.mxu0
    %v589 = vadd.f32 %v286, %v588
    %v590 = vpop.f32.mrf.mxu0
    %v591 = vpop.f32.mrf.mxu0
    %v592 = vadd.f32 %v291, %v591
    %v593 = vpop.f32.mrf.mxu0
    %594 = vmatprep.mubr.bf16.mxu0 0
    %595 = vmatmul.mubr.bf16.gmra.mxu0 %v451
    %v596 = vpop.f32.mrf.mxu0
    %v597 = vadd.f32 %v296, %v596
    %v598 = vpop.f32.mrf.mxu0
    %v599 = vpop.f32.mrf.mxu0
    %v600 = vadd.f32 %v301, %v599
    %v601 = vpop.f32.mrf.mxu0
    %602 = vmatprep.mubr.bf16.mxu0 0
    %603 = vmatmul.mubr.bf16.gmra.mxu0 %v454
    %v604 = vpop.f32.mrf.mxu0
    %v605 = vadd.f32 %v306, %v604
    %v606 = vpop.f32.mrf.mxu0
    %v607 = vpop.f32.mrf.mxu0
    %v608 = vadd.f32 %v311, %v607
    %v609 = vpop.f32.mrf.mxu0
    %610 = vmatprep.mubr.bf16.mxu0 0
    %611 = vmatmul.mubr.bf16.gmra.mxu0 %v457
    %v612 = vpop.f32.mrf.mxu0
    %v613 = vadd.f32 %v316, %v612
    %v614 = vpop.f32.mrf.mxu0
    %v615 = vpop.f32.mrf.mxu0
    %v616 = vadd.f32 %v321, %v615
    %v617 = vpop.f32.mrf.mxu0
    %618 = vmatprep.mubr.bf16.mxu0 0
    %619 = vmatmul.mubr.bf16.gmra.mxu0 %v460
    %v620 = vpop.f32.mrf.mxu0
    %v621 = vadd.f32 %v326, %v620
    %v622 = vpop.f32.mrf.mxu0
    %v623 = vpop.f32.mrf.mxu0
    %v624 = vadd.f32 %v331, %v623
    %v625 = vpop.f32.mrf.mxu0
    %626 = vdwg.mxu0
    %vm627 = vcmp.ge.f32.partialorder %v501, 0.0
    %vm628 = vcmp.ge.f32.partialorder %v504, 0.0
    %vm629 = vcmp.ge.f32.partialorder %v509, 0.0
    %vm630 = vcmp.ge.f32.partialorder %v512, 0.0
    %vm631 = vcmp.ge.f32.partialorder %v517, 0.0
    %vm632 = vcmp.ge.f32.partialorder %v520, 0.0
    %vm633 = vcmp.ge.f32.partialorder %v525, 0.0
    %vm634 = vcmp.ge.f32.partialorder %v528, 0.0
    %vm635 = vcmp.ge.f32.partialorder %v533, 0.0
    %vm636 = vcmp.ge.f32.partialorder %v536, 0.0
    %vm637 = vcmp.ge.f32.partialorder %v541, 0.0
    %vm638 = vcmp.ge.f32.partialorder %v544, 0.0
    %vm639 = vcmp.ge.f32.partialorder %v549, 0.0
    %vm640 = vcmp.ge.f32.partialorder %v552, 0.0
    %vm641 = vcmp.ge.f32.partialorder %v557, 0.0
    %vm642 = vcmp.ge.f32.partialorder %v560, 0.0
    %vm643 = vcmp.ge.f32.partialorder %v565, 0.0
    %vm644 = vcmp.ge.f32.partialorder %v568, 0.0
    %vm645 = vcmp.ge.f32.partialorder %v573, 0.0
    %vm646 = vcmp.ge.f32.partialorder %v576, 0.0
    %vm647 = vcmp.ge.f32.partialorder %v581, 0.0
    %vm648 = vcmp.ge.f32.partialorder %v584, 0.0
    %vm649 = vcmp.ge.f32.partialorder %v589, 0.0
    %vm650 = vcmp.ge.f32.partialorder %v592, 0.0
    %vm651 = vcmp.ge.f32.partialorder %v597, 0.0
    %vm652 = vcmp.ge.f32.partialorder %v600, 0.0
    %vm653 = vcmp.ge.f32.partialorder %v605, 0.0
    %vm654 = vcmp.ge.f32.partialorder %v608, 0.0
    %vm655 = vcmp.ge.f32.partialorder %v613, 0.0
    %vm656 = vcmp.ge.f32.partialorder %v616, 0.0
    %vm657 = vcmp.ge.f32.partialorder %v621, 0.0
    %vm658 = vcmp.ge.f32.partialorder %v624, 0.0
    %v659 = vstv %s44
    %v660 = vmul.f32 %v659, %v501
    %v661 = vmul.f32 %v659, %v504
    %v662 = vmul.f32 %v659, %v509
    %v663 = vmul.f32 %v659, %v512
    %v664 = vmul.f32 %v659, %v517
    %v665 = vmul.f32 %v659, %v520
    %v666 = vmul.f32 %v659, %v525
    %v667 = vmul.f32 %v659, %v528
    %v668 = vmul.f32 %v659, %v533
    %v669 = vmul.f32 %v659, %v536
    %v670 = vmul.f32 %v659, %v541
    %v671 = vmul.f32 %v659, %v544
    %v672 = vmul.f32 %v659, %v549
    %v673 = vmul.f32 %v659, %v552
    %v674 = vmul.f32 %v659, %v557
    %v675 = vmul.f32 %v659, %v560
    %v676 = vmul.f32 %v659, %v565
    %v677 = vmul.f32 %v659, %v568
    %v678 = vmul.f32 %v659, %v573
    %v679 = vmul.f32 %v659, %v576
    %v680 = vmul.f32 %v659, %v581
    %v681 = vmul.f32 %v659, %v584
    %v682 = vmul.f32 %v659, %v589
    %v683 = vmul.f32 %v659, %v592
    %v684 = vmul.f32 %v659, %v597
    %v685 = vmul.f32 %v659, %v600
    %v686 = vmul.f32 %v659, %v605
    %v687 = vmul.f32 %v659, %v608
    %v688 = vmul.f32 %v659, %v613
    %v689 = vmul.f32 %v659, %v616
    %v690 = vmul.f32 %v659, %v621
    %v691 = vmul.f32 %v659, %v624
    %v692 = vsel %vm627, %v501, %v660
    %v693 = vsel %vm628, %v504, %v661
    %v694 = vsel %vm629, %v509, %v662
    %v695 = vsel %vm630, %v512, %v663
    %v696 = vsel %vm631, %v517, %v664
    %v697 = vsel %vm632, %v520, %v665
    %v698 = vsel %vm633, %v525, %v666
    %v699 = vsel %vm634, %v528, %v667
    %v700 = vsel %vm635, %v533, %v668
    %v701 = vsel %vm636, %v536, %v669
    %v702 = vsel %vm637, %v541, %v670
    %v703 = vsel %vm638, %v544, %v671
    %v704 = vsel %vm639, %v549, %v672
    %v705 = vsel %vm640, %v552, %v673
    %v706 = vsel %vm641, %v557, %v674
    %v707 = vsel %vm642, %v560, %v675
    %v708 = vsel %vm643, %v565, %v676
    %v709 = vsel %vm644, %v568, %v677
    %v710 = vsel %vm645, %v573, %v678
    %v711 = vsel %vm646, %v576, %v679
    %v712 = vsel %vm647, %v581, %v680
    %v713 = vsel %vm648, %v584, %v681
    %v714 = vsel %vm649, %v589, %v682
    %v715 = vsel %vm650, %v592, %v683
    %v716 = vsel %vm651, %v597, %v684
    %v717 = vsel %vm652, %v600, %v685
    %v718 = vsel %vm653, %v605, %v686
    %v719 = vsel %vm654, %v608, %v687
    %v720 = vsel %vm655, %v613, %v688
    %v721 = vsel %vm656, %v616, %v689
    %v722 = vsel %vm657, %v621, %v690
    %v723 = vsel %vm658, %v624, %v691
    %v724 = vpack.c.bf16 %v693, %v692
    %v725 = vpack.c.bf16 %v695, %v694
    %v726 = vpack.c.bf16 %v697, %v696
    %v727 = vpack.c.bf16 %v699, %v698
    %v728 = vpack.c.bf16 %v701, %v700
    %v729 = vpack.c.bf16 %v703, %v702
    %v730 = vpack.c.bf16 %v705, %v704
    %v731 = vpack.c.bf16 %v707, %v706
    %v732 = vpack.c.bf16 %v709, %v708
    %v733 = vpack.c.bf16 %v711, %v710
    %v734 = vpack.c.bf16 %v713, %v712
    %v735 = vpack.c.bf16 %v715, %v714
    %v736 = vpack.c.bf16 %v717, %v716
    %v737 = vpack.c.bf16 %v719, %v718
    %v738 = vpack.c.bf16 %v721, %v720
    %v739 = vpack.c.bf16 %v723, %v722
    %v740 = vld [vmem:[%s5] sm:$0xff]
    %v741 = vld [vmem:[%s5 + $0x8] sm:$0xff]
    %v742 = vld [vmem:[%s5 + $0x10] sm:$0xff]
    %v743 = vld [vmem:[%s5 + $0x18] sm:$0xff]
    %v744 = vld [vmem:[%s5 + $0x20] sm:$0xff]
    %v745 = vld [vmem:[%s5 + $0x28] sm:$0xff]
    %v746 = vld [vmem:[%s5 + $0x30] sm:$0xff]
    %v747 = vld [vmem:[%s5 + $0x38] sm:$0xff]
    %v748 = vld [vmem:[%s5 + $0x40] sm:$0xff]
    %v749 = vld [vmem:[%s5 + $0x48] sm:$0xff]
    %v750 = vld [vmem:[%s5 + $0x50] sm:$0xff]
    %v751 = vld [vmem:[%s5 + $0x58] sm:$0xff]
    %v752 = vld [vmem:[%s5 + $0x60] sm:$0xff]
    %v753 = vld [vmem:[%s5 + $0x68] sm:$0xff]
    %v754 = vld [vmem:[%s5 + $0x70] sm:$0xff]
    %v755 = vld [vmem:[%s5 + $0x78] sm:$0xff]
    %v756 = vld [vmem:[%s6] sm:$0xff]
    %v757 = vld [vmem:[%s6 + $0x8] sm:$0xff]
    %v758 = vld [vmem:[%s6 + $0x10] sm:$0xff]
    %v759 = vld [vmem:[%s6 + $0x18] sm:$0xff]
    %v760 = vld [vmem:[%s6 + $0x20] sm:$0xff]
    %v761 = vld [vmem:[%s6 + $0x28] sm:$0xff]
    %v762 = vld [vmem:[%s6 + $0x30] sm:$0xff]
    %v763 = vld [vmem:[%s6 + $0x38] sm:$0xff]
    %v764 = vld [vmem:[%s6 + $0x40] sm:$0xff]
    %v765 = vld [vmem:[%s6 + $0x48] sm:$0xff]
    %v766 = vld [vmem:[%s6 + $0x50] sm:$0xff]
    %v767 = vld [vmem:[%s6 + $0x58] sm:$0xff]
    %v768 = vld [vmem:[%s6 + $0x60] sm:$0xff]
    %v769 = vld [vmem:[%s6 + $0x68] sm:$0xff]
    %v770 = vld [vmem:[%s6 + $0x70] sm:$0xff]
    %v771 = vld [vmem:[%s6 + $0x78] sm:$0xff]
    %773 = vset.pattern.permute.xlu0 0
    %774 = vperm.xlu0 %773, %v756
    %v775 = vpop.permute.xlu0 %774
    %778 = vset.pattern.permute.xlu0 0
    %779 = vperm.xlu0 %778, %v757
    %v780 = vpop.permute.xlu0 %779
    %783 = vset.pattern.permute.xlu0 0
    %784 = vperm.xlu0 %783, %v758
    %v785 = vpop.permute.xlu0 %784
    %788 = vset.pattern.permute.xlu0 0
    %789 = vperm.xlu0 %788, %v759
    %v790 = vpop.permute.xlu0 %789
    %793 = vset.pattern.permute.xlu0 0
    %794 = vperm.xlu0 %793, %v760
    %v795 = vpop.permute.xlu0 %794
    %798 = vset.pattern.permute.xlu0 0
    %799 = vperm.xlu0 %798, %v761
    %v800 = vpop.permute.xlu0 %799
    %803 = vset.pattern.permute.xlu0 0
    %804 = vperm.xlu0 %803, %v762
    %v805 = vpop.permute.xlu0 %804
    %808 = vset.pattern.permute.xlu0 0
    %809 = vperm.xlu0 %808, %v763
    %v810 = vpop.permute.xlu0 %809
    %813 = vset.pattern.permute.xlu0 0
    %814 = vperm.xlu0 %813, %v764
    %v815 = vpop.permute.xlu0 %814
    %818 = vset.pattern.permute.xlu0 0
    %819 = vperm.xlu0 %818, %v765
    %v820 = vpop.permute.xlu0 %819
    %823 = vset.pattern.permute.xlu0 0
    %824 = vperm.xlu0 %823, %v766
    %v825 = vpop.permute.xlu0 %824
    %828 = vset.pattern.permute.xlu0 0
    %829 = vperm.xlu0 %828, %v767
    %v830 = vpop.permute.xlu0 %829
    %833 = vset.pattern.permute.xlu0 0
    %834 = vperm.xlu0 %833, %v768
    %v835 = vpop.permute.xlu0 %834
    %838 = vset.pattern.permute.xlu0 0
    %839 = vperm.xlu0 %838, %v769
    %v840 = vpop.permute.xlu0 %839
    %843 = vset.pattern.permute.xlu0 0
    %844 = vperm.xlu0 %843, %v770
    %v845 = vpop.permute.xlu0 %844
    %848 = vset.pattern.permute.xlu0 0
    %849 = vperm.xlu0 %848, %v771
    %v850 = vpop.permute.xlu0 %849
    %v868 = vunpack.c.l.b16 %v740
    %v869 = vunpack.c.h.b16 %v740
    %v870 = vunpack.c.l.b16 %v741
    %v871 = vunpack.c.h.b16 %v741
    %v872 = vunpack.c.l.b16 %v742
    %v873 = vunpack.c.h.b16 %v742
    %v874 = vunpack.c.l.b16 %v743
    %v875 = vunpack.c.h.b16 %v743
    %v876 = vunpack.c.l.b16 %v744
    %v877 = vunpack.c.h.b16 %v744
    %v878 = vunpack.c.l.b16 %v745
    %v879 = vunpack.c.h.b16 %v745
    %v880 = vunpack.c.l.b16 %v746
    %v881 = vunpack.c.h.b16 %v746
    %v882 = vunpack.c.l.b16 %v747
    %v883 = vunpack.c.h.b16 %v747
    %v884 = vunpack.c.l.b16 %v748
    %v885 = vunpack.c.h.b16 %v748
    %v886 = vunpack.c.l.b16 %v749
    %v887 = vunpack.c.h.b16 %v749
    %v888 = vunpack.c.l.b16 %v750
    %v889 = vunpack.c.h.b16 %v750
    %v890 = vunpack.c.l.b16 %v751
    %v891 = vunpack.c.h.b16 %v751
    %v892 = vunpack.c.l.b16 %v752
    %v893 = vunpack.c.h.b16 %v752
    %v894 = vunpack.c.l.b16 %v753
    %v895 = vunpack.c.h.b16 %v753
    %v896 = vunpack.c.l.b16 %v754
    %v897 = vunpack.c.h.b16 %v754
    %v898 = vunpack.c.l.b16 %v755
    %v899 = vunpack.c.h.b16 %v755
    %v900 = vpack.c.b16 %v870, %v868
    %v901 = vpack.c.b16 %v871, %v869
    %v902 = vpack.c.b16 %v874, %v872
    %v903 = vpack.c.b16 %v875, %v873
    %v904 = vpack.c.b16 %v878, %v876
    %v905 = vpack.c.b16 %v879, %v877
    %v906 = vpack.c.b16 %v882, %v880
    %v907 = vpack.c.b16 %v883, %v881
    %v908 = vpack.c.b16 %v886, %v884
    %v909 = vpack.c.b16 %v887, %v885
    %v910 = vpack.c.b16 %v890, %v888
    %v911 = vpack.c.b16 %v891, %v889
    %v912 = vpack.c.b16 %v894, %v892
    %v913 = vpack.c.b16 %v895, %v893
    %v914 = vpack.c.b16 %v898, %v896
    %v915 = vpack.c.b16 %v899, %v897
    %932 = vmatprep.subr.bf16.mxu0 0
    %933 = vmatpush1.bf16.msra.mxu0 %v731
    %934 = vmatprep.subr.bf16.mxu0 0
    %935 = vmatpush1.bf16.msra.mxu0 %v730
    %936 = vmatprep.subr.bf16.mxu0 0
    %937 = vmatpush1.bf16.msra.mxu0 %v729
    %938 = vmatprep.subr.bf16.mxu0 0
    %939 = vmatpush1.bf16.msra.mxu0 %v728
    %940 = vmatprep.subr.bf16.mxu0 0
    %941 = vmatpush1.bf16.msra.mxu0 %v727
    %942 = vmatprep.subr.bf16.mxu0 0
    %943 = vmatpush1.bf16.msra.mxu0 %v726
    %944 = vmatprep.subr.bf16.mxu0 0
    %945 = vmatpush1.bf16.msra.mxu0 %v725
    %946 = vmatprep.subr.bf16.mxu0 0
    %947 = vmatpush1.bf16.msra.mxu0 %v724
    %948 = vmatprep.subr.bf16.mxu0 0
    %949 = vmatpush2.bf16.msra.mxu0 %v739
    %950 = vmatprep.subr.bf16.mxu0 0
    %951 = vmatpush2.bf16.msra.mxu0 %v738
    %952 = vmatprep.subr.bf16.mxu0 0
    %953 = vmatpush2.bf16.msra.mxu0 %v737
    %954 = vmatprep.subr.bf16.mxu0 0
    %955 = vmatpush2.bf16.msra.mxu0 %v736
    %956 = vmatprep.subr.bf16.mxu0 0
    %957 = vmatpush2.bf16.msra.mxu0 %v735
    %958 = vmatprep.subr.bf16.mxu0 0
    %959 = vmatpush2.bf16.msra.mxu0 %v734
    %960 = vmatprep.subr.bf16.mxu0 0
    %961 = vmatpush2.bf16.msra.mxu0 %v733
    %962 = vmatprep.subr.bf16.mxu0 0
    %963 = vmatpush2.bf16.msra.mxu0 %v732
    %964 = vmatprep.mubr.bf16.mxu0 %v901
    %965 = vmatmul.mubr.bf16.gmra.mxu0 %v900
    %v966 = vpop.f32.mrf.mxu0
    %v967 = vadd.f32 %v775, %v966
    %v968 = vpop.f32.mrf.mxu0
    %v969 = vpop.f32.mrf.mxu0
    %v970 = vadd.f32 %v780, %v969
    %v971 = vpop.f32.mrf.mxu0
    %972 = vmatprep.mubr.bf16.mxu0 %v903
    %973 = vmatmul.mubr.bf16.gmra.mxu0 %v902
    %v974 = vpop.f32.mrf.mxu0
    %v975 = vadd.f32 %v785, %v974
    %v976 = vpop.f32.mrf.mxu0
    %v977 = vpop.f32.mrf.mxu0
    %v978 = vadd.f32 %v790, %v977
    %v979 = vpop.f32.mrf.mxu0
    %980 = vmatprep.mubr.bf16.mxu0 %v905
    %981 = vmatmul.mubr.bf16.gmra.mxu0 %v904
    %v982 = vpop.f32.mrf.mxu0
    %v983 = vadd.f32 %v795, %v982
    %v984 = vpop.f32.mrf.mxu0
    %v985 = vpop.f32.mrf.mxu0
    %v986 = vadd.f32 %v800, %v985
    %v987 = vpop.f32.mrf.mxu0
    %988 = vmatprep.mubr.bf16.mxu0 %v907
    %989 = vmatmul.mubr.bf16.gmra.mxu0 %v906
    %v990 = vpop.f32.mrf.mxu0
    %v991 = vadd.f32 %v805, %v990
    %v992 = vpop.f32.mrf.mxu0
    %v993 = vpop.f32.mrf.mxu0
    %v994 = vadd.f32 %v810, %v993
    %v995 = vpop.f32.mrf.mxu0
    %996 = vmatprep.mubr.bf16.mxu0 %v909
    %997 = vmatmul.mubr.bf16.gmra.mxu0 %v908
    %v998 = vpop.f32.mrf.mxu0
    %v999 = vadd.f32 %v815, %v998
    %v1000 = vpop.f32.mrf.mxu0
    %v1001 = vpop.f32.mrf.mxu0
    %v1002 = vadd.f32 %v820, %v1001
    %v1003 = vpop.f32.mrf.mxu0
    %1004 = vmatprep.mubr.bf16.mxu0 %v911
    %1005 = vmatmul.mubr.bf16.gmra.mxu0 %v910
    %v1006 = vpop.f32.mrf.mxu0
    %v1007 = vadd.f32 %v825, %v1006
    %v1008 = vpop.f32.mrf.mxu0
    %v1009 = vpop.f32.mrf.mxu0
    %v1010 = vadd.f32 %v830, %v1009
    %v1011 = vpop.f32.mrf.mxu0
    %1012 = vmatprep.mubr.bf16.mxu0 %v913
    %1013 = vmatmul.mubr.bf16.gmra.mxu0 %v912
    %v1014 = vpop.f32.mrf.mxu0
    %v1015 = vadd.f32 %v835, %v1014
    %v1016 = vpop.f32.mrf.mxu0
    %v1017 = vpop.f32.mrf.mxu0
    %v1018 = vadd.f32 %v840, %v1017
    %v1019 = vpop.f32.mrf.mxu0
    %1020 = vmatprep.mubr.bf16.mxu0 %v915
    %1021 = vmatmul.mubr.bf16.gmra.mxu0 %v914
    %v1022 = vpop.f32.mrf.mxu0
    %v1023 = vadd.f32 %v845, %v1022
    %v1024 = vpop.f32.mrf.mxu0
    %v1025 = vpop.f32.mrf.mxu0
    %v1026 = vadd.f32 %v850, %v1025
    %v1027 = vpop.f32.mrf.mxu0
    %1028 = vdwg.mxu0
    %vm1029 = vcmp.ge.f32.partialorder %v967, 0.0
    %vm1030 = vcmp.ge.f32.partialorder %v970, 0.0
    %vm1031 = vcmp.ge.f32.partialorder %v975, 0.0
    %vm1032 = vcmp.ge.f32.partialorder %v978, 0.0
    %vm1033 = vcmp.ge.f32.partialorder %v983, 0.0
    %vm1034 = vcmp.ge.f32.partialorder %v986, 0.0
    %vm1035 = vcmp.ge.f32.partialorder %v991, 0.0
    %vm1036 = vcmp.ge.f32.partialorder %v994, 0.0
    %vm1037 = vcmp.ge.f32.partialorder %v999, 0.0
    %vm1038 = vcmp.ge.f32.partialorder %v1002, 0.0
    %vm1039 = vcmp.ge.f32.partialorder %v1007, 0.0
    %vm1040 = vcmp.ge.f32.partialorder %v1010, 0.0
    %vm1041 = vcmp.ge.f32.partialorder %v1015, 0.0
    %vm1042 = vcmp.ge.f32.partialorder %v1018, 0.0
    %vm1043 = vcmp.ge.f32.partialorder %v1023, 0.0
    %vm1044 = vcmp.ge.f32.partialorder %v1026, 0.0
    %v1045 = vstv %s45
    %v1046 = vmul.f32 %v1045, %v967
    %v1047 = vmul.f32 %v1045, %v970
    %v1048 = vmul.f32 %v1045, %v975
    %v1049 = vmul.f32 %v1045, %v978
    %v1050 = vmul.f32 %v1045, %v983
    %v1051 = vmul.f32 %v1045, %v986
    %v1052 = vmul.f32 %v1045, %v991
    %v1053 = vmul.f32 %v1045, %v994
    %v1054 = vmul.f32 %v1045, %v999
    %v1055 = vmul.f32 %v1045, %v1002
    %v1056 = vmul.f32 %v1045, %v1007
    %v1057 = vmul.f32 %v1045, %v1010
    %v1058 = vmul.f32 %v1045, %v1015
    %v1059 = vmul.f32 %v1045, %v1018
    %v1060 = vmul.f32 %v1045, %v1023
    %v1061 = vmul.f32 %v1045, %v1026
    %v1062 = vsel %vm1029, %v967, %v1046
    %v1063 = vsel %vm1030, %v970, %v1047
    %v1064 = vsel %vm1031, %v975, %v1048
    %v1065 = vsel %vm1032, %v978, %v1049
    %v1066 = vsel %vm1033, %v983, %v1050
    %v1067 = vsel %vm1034, %v986, %v1051
    %v1068 = vsel %vm1035, %v991, %v1052
    %v1069 = vsel %vm1036, %v994, %v1053
    %v1070 = vsel %vm1037, %v999, %v1054
    %v1071 = vsel %vm1038, %v1002, %v1055
    %v1072 = vsel %vm1039, %v1007, %v1056
    %v1073 = vsel %vm1040, %v1010, %v1057
    %v1074 = vsel %vm1041, %v1015, %v1058
    %v1075 = vsel %vm1042, %v1018, %v1059
    %v1076 = vsel %vm1043, %v1023, %v1060
    %v1077 = vsel %vm1044, %v1026, %v1061
    %v1078 = vld [vmem:[%s7] sm:$0xff]
    %v1079 = vld [vmem:[%s7 + $0x8] sm:$0xff]
    %v1080 = vld [vmem:[%s7 + $0x10] sm:$0xff]
    %v1081 = vld [vmem:[%s7 + $0x18] sm:$0xff]
    %v1082 = vld [vmem:[%s7 + $0x20] sm:$0xff]
    %v1083 = vld [vmem:[%s7 + $0x28] sm:$0xff]
    %v1084 = vld [vmem:[%s7 + $0x30] sm:$0xff]
    %v1085 = vld [vmem:[%s7 + $0x38] sm:$0xff]
    %v1086 = vld [vmem:[%s7 + $0x40] sm:$0xff]
    %v1087 = vld [vmem:[%s7 + $0x48] sm:$0xff]
    %v1088 = vld [vmem:[%s7 + $0x50] sm:$0xff]
    %v1089 = vld [vmem:[%s7 + $0x58] sm:$0xff]
    %v1090 = vld [vmem:[%s7 + $0x60] sm:$0xff]
    %v1091 = vld [vmem:[%s7 + $0x68] sm:$0xff]
    %v1092 = vld [vmem:[%s7 + $0x70] sm:$0xff]
    %v1093 = vld [vmem:[%s7 + $0x78] sm:$0xff]
    %1095 = vset.pattern.permute.xlu0 0
    %1096 = vperm.xlu0 %1095, %v1078
    %v1097 = vpop.permute.xlu0 %1096
    %1100 = vset.pattern.permute.xlu0 0
    %1101 = vperm.xlu0 %1100, %v1079
    %v1102 = vpop.permute.xlu0 %1101
    %1105 = vset.pattern.permute.xlu0 0
    %1106 = vperm.xlu0 %1105, %v1080
    %v1107 = vpop.permute.xlu0 %1106
    %1110 = vset.pattern.permute.xlu0 0
    %1111 = vperm.xlu0 %1110, %v1081
    %v1112 = vpop.permute.xlu0 %1111
    %1115 = vset.pattern.permute.xlu0 0
    %1116 = vperm.xlu0 %1115, %v1082
    %v1117 = vpop.permute.xlu0 %1116
    %1120 = vset.pattern.permute.xlu0 0
    %1121 = vperm.xlu0 %1120, %v1083
    %v1122 = vpop.permute.xlu0 %1121
    %1125 = vset.pattern.permute.xlu0 0
    %1126 = vperm.xlu0 %1125, %v1084
    %v1127 = vpop.permute.xlu0 %1126
    %1130 = vset.pattern.permute.xlu0 0
    %1131 = vperm.xlu0 %1130, %v1085
    %v1132 = vpop.permute.xlu0 %1131
    %1135 = vset.pattern.permute.xlu0 0
    %1136 = vperm.xlu0 %1135, %v1086
    %v1137 = vpop.permute.xlu0 %1136
    %1140 = vset.pattern.permute.xlu0 0
    %1141 = vperm.xlu0 %1140, %v1087
    %v1142 = vpop.permute.xlu0 %1141
    %1145 = vset.pattern.permute.xlu0 0
    %1146 = vperm.xlu0 %1145, %v1088
    %v1147 = vpop.permute.xlu0 %1146
    %1150 = vset.pattern.permute.xlu0 0
    %1151 = vperm.xlu0 %1150, %v1089
    %v1152 = vpop.permute.xlu0 %1151
    %1155 = vset.pattern.permute.xlu0 0
    %1156 = vperm.xlu0 %1155, %v1090
    %v1157 = vpop.permute.xlu0 %1156
    %1160 = vset.pattern.permute.xlu0 0
    %1161 = vperm.xlu0 %1160, %v1091
    %v1162 = vpop.permute.xlu0 %1161
    %1165 = vset.pattern.permute.xlu0 0
    %1166 = vperm.xlu0 %1165, %v1092
    %v1167 = vpop.permute.xlu0 %1166
    %1170 = vset.pattern.permute.xlu0 0
    %1171 = vperm.xlu0 %1170, %v1093
    %v1172 = vpop.permute.xlu0 %1171
    %v1174 = vmul.f32 %v1062, %v1097
    %v1175 = vmul.f32 %v1063, %v1102
    %v1176 = vmul.f32 %v1064, %v1107
    %v1177 = vmul.f32 %v1065, %v1112
    %v1178 = vmul.f32 %v1066, %v1117
    %v1179 = vmul.f32 %v1067, %v1122
    %v1180 = vmul.f32 %v1068, %v1127
    %v1181 = vmul.f32 %v1069, %v1132
    %v1182 = vmul.f32 %v1070, %v1137
    %v1183 = vmul.f32 %v1071, %v1142
    %v1184 = vmul.f32 %v1072, %v1147
    %v1185 = vmul.f32 %v1073, %v1152
    %v1186 = vmul.f32 %v1074, %v1157
    %v1187 = vmul.f32 %v1075, %v1162
    %v1188 = vmul.f32 %v1076, %v1167
    %v1189 = vmul.f32 %v1077, %v1172
    %v1190 = vadd.f32 %v1174, %v1175
    %v1191 = vadd.f32 %v1190, %v1176
    %v1192 = vadd.f32 %v1191, %v1177
    %v1193 = vadd.f32 %v1192, %v1178
    %v1194 = vadd.f32 %v1193, %v1179
    %v1195 = vadd.f32 %v1194, %v1180
    %v1196 = vadd.f32 %v1195, %v1181
    %v1197 = vadd.f32 %v1196, %v1182
    %v1198 = vadd.f32 %v1197, %v1183
    %v1199 = vadd.f32 %v1198, %v1184
    %v1200 = vadd.f32 %v1199, %v1185
    %v1201 = vadd.f32 %v1200, %v1186
    %v1202 = vadd.f32 %v1201, %v1187
    %v1203 = vadd.f32 %v1202, %v1188
    %v1204 = vadd.f32 %v1203, %v1189
    %v1205 = vrot.slane %v1204, 4
    %v1206 = vadd.f32 %v1204, %v1205
    %v1207 = vrot.slane %v1206, 2
    %v1208 = vadd.f32 %v1206, %v1207
    %v1209 = vrot.slane %v1208, 1
    %v1210 = vadd.f32 %v1208, %v1209
    %1211 = vst [vmem:[#allocation5] sm:$0x1] %v1210
    // Predicated region
    $region38: #{tpu_custom_call.1} parent=1 // pred_check
      _
    $region39: #{tpu_custom_call.1} parent=1 // pred_check_branch
      %1213 = sbr.rel (0) target = $region41
    $region40: #{tpu_custom_call.1} parent=1 // pred_region
      %s1215 = ssub.s32 16, 16
      %1216 = vsyncadd [#allocation3], %s1215
      %s1218 = sshll.u32 [#allocation5], 4
      %s1219 = int_to_ptr.vmem [resolvable:$true] %s1218
      %1221 = dma.vmem_to_hbm [thread:$0]  %s1219, 16, %s8, [#allocation3]
    $region41: #{tpu_custom_call.1} parent=1 // pred_fallthru
      _
    // Predicated region
    $region42: #{tpu_custom_call.1} parent=1 // pred_check
      _
    $region43: #{tpu_custom_call.1} parent=1 // pred_check_branch
      %1223 = sbr.rel (0) target = $region45
    $region44: #{tpu_custom_call.1} parent=1 // pred_region
      %1224 = dma.done [#allocation3], 16
    $region45: #{tpu_custom_call.1} parent=1 // pred_fallthru
      _
    %1225 = vsyncpa [#allocation3], 1
    %1226 = vsyncpa [#allocation4], 1

</llo_original>
